<compile_context>
chip_gen: v7x
topology: tpu7x:2x2x1
jax: 0.10.0
libtpu: 0.0.40
codegen_flags: <defaults>
</compile_context>

<pallas_src>
import jax
import jax.numpy as jnp
from jax.experimental import pallas as pl
from jax.experimental.pallas import tpu as pltpu


def _round_up(a: int, b: int) -> int:
    return (a + b - 1) // b * b


def _cdiv(a: int, b: int) -> int:
    return (a + b - 1) // b


def _device_vmem_bytes() -> int:
    """Physical VMEM of the attached TPU generation (conservative fallback)."""
    try:
        info = pltpu.get_tpu_info()
        cap = int(getattr(info, "vmem_capacity_bytes", 0))
        if cap > 0:
            return cap
    except Exception:
        pass
    return 64 * 2 ** 20  # v7x-safe conservative default


def ffn_kernel(x_ref, w1_ref, w2_ref, b2_ref, o_ref, acc_ref):
    """One (row-tile i, col-tile j, hidden-chunk k) grid step.

    x_ref:   (tm, d_model_p)  mxu dtype   -- row tile i of x
    w1_ref:  (d_model_p, tk)  mxu dtype   -- hidden chunk k of W1
    w2_ref:  (tk, tn)         mxu dtype   -- (hidden chunk k, col tile j) of W2
    b2_ref:  (1, tn)          f32         -- folded bias (b1 @ W2 + b2), col tile j
    o_ref:   (tm, tn)         out dtype
    acc_ref: (tm, tn)         f32 VMEM accumulator
    """
    k = pl.program_id(2)

    @pl.when(k == 0)
    def _init():
        acc_ref[...] = jnp.zeros_like(acc_ref)

    # layer1 partial: (tm, tk), f32 accumulation on the MXU.
    h = jnp.dot(x_ref[...], w1_ref[...], preferred_element_type=jnp.float32)
    # layer2 partial, accumulated into the f32 scratch.
    acc_ref[...] += jnp.dot(h.astype(w2_ref.dtype), w2_ref[...],
                            preferred_element_type=jnp.float32)

    @pl.when(k == pl.num_programs(2) - 1)
    def _finalize():
        y = acc_ref[...] + b2_ref[...]
        o_ref[...] = jnp.maximum(y, 0.0).astype(o_ref.dtype)


def prepare_ffn(w1, b1, w2, b2, *, mxu_dtype=jnp.bfloat16, tk_h=512,
                vmem_cap=None):
    """Pad + cast the weights ONCE (hoisted out of the per-call hot path).

    w1: (d_model, hidden), b1: (hidden,), w2: (hidden, d_model), b2: (d_model,)
    Weights stored [in, out] (transpose of torch's [out, in]).
    mxu_dtype=jnp.float32 gives torch-parity numerics; bf16 is the perf default.
    """
    d_model, hidden = w1.shape
    if vmem_cap is None:
        vmem_cap = _device_vmem_bytes()
    dsize = jnp.dtype(mxu_dtype).itemsize

    d_model_p = _round_up(d_model, 128)
    hidden_128 = _round_up(hidden, 128)

    # Hidden-chunk size: (a) bounded so double-buffered W1+W2 slabs use at most
    # ~45% of physical VMEM, (b) split evenly so hidden_p padding is minimal
    # (no nearly-empty trailing k-step).
    tk_vmem = (int(vmem_cap * 0.45) // (4 * d_model_p * dsize)) // 128 * 128
    tk_cap = max(128, min(tk_h, max(tk_vmem, 128), hidden_128))
    n_k = _cdiv(hidden_128, tk_cap)
    tk = _round_up(_cdiv(hidden_128, n_k), 128)
    hidden_p = n_k * tk

    f32 = jnp.float32
    # Fold b1 into b2: relu((x@W1+b1)@W2+b2) == relu(x@W1@W2 + (b1@W2+b2)).
    # Exact up to fp reassociation (the inter-layer path is affine).
    b2_eff = b1.astype(f32) @ w2.astype(f32) + b2.astype(f32)

    w1_p = jnp.zeros((d_model_p, hidden_p), mxu_dtype).at[:d_model, :hidden].set(
        w1.astype(mxu_dtype))
    w2_p = jnp.zeros((hidden_p, d_model_p), mxu_dtype).at[:hidden, :d_model].set(
        w2.astype(mxu_dtype))
    b2_p = jnp.zeros((1, d_model_p), f32).at[0, :d_model].set(b2_eff)

    return dict(w1_p=w1_p, w2_p=w2_p, b2_p=b2_p,
                d_model=d_model, hidden=hidden,
                d_model_p=d_model_p, hidden_p=hidden_p,
                tk=tk, n_k=n_k, mxu_dtype=mxu_dtype, vmem_cap=vmem_cap)


def ffn_apply(params, x, *, tm=512, out_dtype=None):
    """Apply the FFN to x: (..., d_model) using pre-padded weights."""
    d_model = params["d_model"]
    hidden = params["hidden"]
    d_model_p = params["d_model_p"]
    hidden_p = params["hidden_p"]
    tk = params["tk"]
    n_k = params["n_k"]
    mxu_dtype = params["mxu_dtype"]
    vmem_cap = params["vmem_cap"]
    dsize = jnp.dtype(mxu_dtype).itemsize

    assert x.shape[-1] == d_model
    lead = x.shape[:-1]
    out_dtype = x.dtype if out_dtype is None else out_dtype
    osize = jnp.dtype(out_dtype).itemsize

    xf = x.reshape(-1, d_model)
    M = xf.shape[0]

    # ---------------- tile sizing (generation-aware) ----------------
    budget = int(vmem_cap * 0.85)                   # never request > physical VMEM
    wslab_bytes = 4 * d_model_p * tk * dsize        # W1 + W2 slabs, double-buffered
    bias_bytes = 2 * d_model_p * 4

    def _max_tm(tn_):
        per_row = (2 * d_model_p * dsize            # x block (double-buffered)
                   + 2 * tn_ * osize                # out block (double-buffered)
                   + tn_ * 4                        # f32 accumulator scratch
                   + tk * (4 + dsize))              # h intermediate (f32 + MXU cast)
        avail = budget - wslab_bytes - bias_bytes
        return max(8, (avail // per_row) // 8 * 8)

    tn = d_model_p
    tm_eff = max(8, min(tm, _max_tm(tn), _round_up(M, 8)) // 8 * 8)
    m_p = _round_up(M, tm_eff)
    grid_m = m_p // tm_eff

    # Small-M / decode shapes: split output columns so a 2-TC chip (v7x) gets
    # two independent parallel work streams.
    if grid_m == 1 and d_model_p % 256 == 0:
        tn = d_model_p // 2
    grid_n = d_model_p // tn

    grid = (grid_m, grid_n, n_k)

    # ---------------- input padding (skipped when already aligned) --------
    if m_p == M and d_model_p == d_model and xf.dtype == mxu_dtype:
        x_p = xf
    else:
        x_p = jnp.zeros((m_p, d_model_p), mxu_dtype).at[:M, :d_model].set(
            xf.astype(mxu_dtype))

    # ---------------- cost / VMEM accounting ------------------------------
    flops = 4 * M * d_model * hidden
    w_bytes = 2 * hidden_p * d_model_p * dsize
    weight_passes = (grid_m * grid_n) if n_k > 1 else max(1, grid_n)
    bytes_accessed = int(m_p * d_model_p * dsize
                         + weight_passes * w_bytes
                         + d_model_p * 4
                         + m_p * d_model_p * osize)

    vmem_bytes = (2 * tm_eff * d_model_p * dsize    # x blocks
                  + wslab_bytes                     # W1/W2 slabs
                  + bias_bytes                      # folded bias
                  + 2 * tm_eff * tn * osize         # output blocks
                  + tm_eff * tn * 4                 # f32 accumulator
                  + tm_eff * tk * (4 + dsize))      # h intermediate
    vmem_limit = int(min(budget, max(32 * 2 ** 20, (vmem_bytes * 5) // 4)))

    out_p = pl.pallas_call(
        ffn_kernel,
        out_shape=jax.ShapeDtypeStruct((m_p, d_model_p), out_dtype),
        grid_spec=pltpu.PrefetchScalarGridSpec(
            num_scalar_prefetch=0,
            grid=grid,
            in_specs=[
                pl.BlockSpec((tm_eff, d_model_p), lambda i, j, k: (i, 0)),  # x rows
                pl.BlockSpec((d_model_p, tk), lambda i, j, k: (0, k)),      # W1 slab
                pl.BlockSpec((tk, tn), lambda i, j, k: (k, j)),             # W2 slab
                pl.BlockSpec((1, tn), lambda i, j, k: (0, j)),              # bias
            ],
            out_specs=pl.BlockSpec((tm_eff, tn), lambda i, j, k: (i, j)),
            scratch_shapes=[pltpu.VMEM((tm_eff, tn), jnp.float32)],
        ),
        compiler_params=pltpu.CompilerParams(
            dimension_semantics=("parallel", "parallel", "arbitrary"),
            vmem_limit_bytes=vmem_limit,
        ),
        cost_estimate=pl.CostEstimate(
            flops=flops, transcendentals=0, bytes_accessed=bytes_accessed),
    )(x_p, params["w1_p"], params["w2_p"], params["b2_p"])

    return out_p[:M, :d_model].reshape(*lead, d_model)


def ffn_pallas(x, w1, b1, w2, b2, *, tm=512, tk_h=512,
               mxu_dtype=jnp.bfloat16, out_dtype=None):
    """Convenience one-shot wrapper. For repeated calls with the same weights,
    call prepare_ffn() once and reuse the result with ffn_apply()."""
    params = prepare_ffn(w1, b1, w2, b2, mxu_dtype=mxu_dtype, tk_h=tk_h)
    return ffn_apply(params, x, tm=tm, out_dtype=out_dtype)


def init_params(key, d_model, hidden):
    # Deterministic init mimicking torch nn.Linear default (uniform +-1/sqrt(fan_in)).
    k1, k2, k3, k4 = jax.random.split(key, 4)
    lim1 = 1.0 / (d_model ** 0.5)
    lim2 = 1.0 / (hidden ** 0.5)
    # Stored as [in, out] (transpose of torch's [out, in]).
    w1 = jax.random.uniform(k1, (d_model, hidden), jnp.float32, -lim1, lim1)
    b1 = jax.random.uniform(k2, (hidden,), jnp.float32, -lim1, lim1)
    w2 = jax.random.uniform(k3, (hidden, d_model), jnp.float32, -lim2, lim2)
    b2 = jax.random.uniform(k4, (d_model,), jnp.float32, -lim2, lim2)
    return w1, b1, w2, b2


if __name__ == "__main__":
    key = jax.random.PRNGKey(0)
    kx, kp, kx2, kp2 = jax.random.split(key, 4)

    # ---- Case 1: module-scale smoke test (batch=2, seq=8, d_model=32, hidden=64)
    batch, seq, d_model, hidden = 2, 8, 32, 64
    x = jax.random.normal(kx, (batch, seq, d_model), jnp.float32)
    w1, b1, w2, b2 = init_params(kp, d_model, hidden)
    ref = jnp.maximum((x @ w1 + b1) @ w2 + b2, 0.0)

    out_f32 = jax.block_until_ready(
        ffn_pallas(x, w1, b1, w2, b2, mxu_dtype=jnp.float32))
    assert out_f32.shape == (batch, seq, d_model)
    assert jnp.allclose(out_f32, ref, atol=1e-4, rtol=1e-4), (
        float(jnp.max(jnp.abs(out_f32 - ref))))

    out_bf16 = jax.block_until_ready(ffn_pallas(x, w1, b1, w2, b2))
    assert out_bf16.shape == (batch, seq, d_model)
    assert jnp.allclose(out_bf16, ref, atol=5e-2, rtol=5e-2), (
        float(jnp.max(jnp.abs(out_bf16 - ref))))

    # ---- Case 2: multi-k streaming + output-column split (grid_m == 1, grid_n == 2)
    d_model2, hidden2 = 256, 384
    x2 = jax.random.normal(kx2, (5, 8, d_model2), jnp.float32)
    w1b, b1b, w2b, b2b = init_params(kp2, d_model2, hidden2)
    ref2 = jnp.maximum((x2 @ w1b + b1b) @ w2b + b2b, 0.0)
    out2 = jax.block_until_ready(
        ffn_pallas(x2, w1b, b1b, w2b, b2b, mxu_dtype=jnp.float32, tk_h=128))
    assert out2.shape == ref2.shape
    assert jnp.allclose(out2, ref2, atol=5e-3, rtol=5e-3), (
        float(jnp.max(jnp.abs(out2 - ref2))))

    # ---- Case 3: multiple M tiles (grid_m > 1) with prepared (hoisted) weights.
    params2 = prepare_ffn(w1b, b1b, w2b, b2b, mxu_dtype=jnp.float32, tk_h=128)
    x3 = jax.random.normal(jax.random.PRNGKey(3), (6, 8, d_model2), jnp.float32)
    ref3 = jnp.maximum((x3 @ w1b + b1b) @ w2b + b2b, 0.0)
    out3 = jax.block_until_ready(ffn_apply(params2, x3, tm=16))
    assert out3.shape == ref3.shape
    assert jnp.allclose(out3, ref3, atol=5e-3, rtol=5e-3), (
        float(jnp.max(jnp.abs(out3 - ref3))))

    print("KERNEL_OK")
</pallas_src>

<mosaic_0001>
module attributes {stable_mosaic.version = 11 : i64} {
  func.func @ffn_kernel(%arg0: i32, %arg1: i32, %arg2: i32, %arg3: memref<16x128xf32, #tpu.memory_space<vmem>>, %arg4: memref<128x128xf32, #tpu.memory_space<vmem>>, %arg5: memref<128x128xf32, #tpu.memory_space<vmem>>, %arg6: memref<1x128xf32, #tpu.memory_space<vmem>>, %arg7: memref<16x128xf32, #tpu.memory_space<vmem>>, %arg8: memref<16x128xf32, #tpu.memory_space<vmem>>) attributes {dimension_semantics = [#tpu.dimension_semantics<parallel>, #tpu.dimension_semantics<parallel>, #tpu.dimension_semantics<arbitrary>], iteration_bounds = array<i64: 1, 1, 1>, scalar_prefetch = 0 : i64, scratch_operands = 1 : i64, tpu.core_type = #tpu.core_type<tc>, window_params = [{transform_indices = @transform_0, window_bounds = array<i64: 16, 128>}, {transform_indices = @transform_1, window_bounds = array<i64: 128, 128>}, {transform_indices = @transform_2, window_bounds = array<i64: 128, 128>}, {transform_indices = @transform_3, window_bounds = array<i64: 1, 128>}, {transform_indices = @transform_4, window_bounds = array<i64: 16, 128>}]} {
    %c0_i32 = arith.constant 0 : i32
    %0 = arith.cmpi eq, %arg2, %c0_i32 : i32
    %1 = arith.extui %0 : i1 to i32
    %c0_i32_0 = arith.constant 0 : i32
    %2 = arith.cmpi ne, %1, %c0_i32_0 : i32
    scf.if %2 {
      %cst_13 = arith.constant 0.000000e+00 : f32
      %14 = vector.broadcast %cst_13 : f32 to vector<16x128xf32>
      %c0_14 = arith.constant 0 : index
      %c0_15 = arith.constant 0 : index
      %15 = vector.load %arg8[%c0_14, %c0_15] : memref<16x128xf32, #tpu.memory_space<vmem>>, vector<16x128xf32>
      tpu.vector_store %arg8[%c0_14, %c0_15], %14 {strides = array<i32>} : memref<16x128xf32, #tpu.memory_space<vmem>>, vector<16x128xf32>,
    } else {
    }
    %c0 = arith.constant 0 : index
    %c0_1 = arith.constant 0 : index
    %3 = vector.load %arg3[%c0, %c0_1] : memref<16x128xf32, #tpu.memory_space<vmem>>, vector<16x128xf32>
    %c0_2 = arith.constant 0 : index
    %c0_3 = arith.constant 0 : index
    %4 = vector.load %arg4[%c0_2, %c0_3] : memref<128x128xf32, #tpu.memory_space<vmem>>, vector<128x128xf32>
    %cst = arith.constant dense<0.000000e+00> : vector<16x128xf32>
    %5 = tpu.matmul %3, %4, %cst {dimension_numbers = #tpu.dot_dimension_numbers<[1], [0], [0], [1], [0, 0, 1, 1], [], []>} : vector<16x128xf32>, vector<128x128xf32>, vector<16x128xf32> -> vector<16x128xf32>
    %c0_4 = arith.constant 0 : index
    %c0_5 = arith.constant 0 : index
    %6 = vector.load %arg8[%c0_4, %c0_5] : memref<16x128xf32, #tpu.memory_space<vmem>>, vector<16x128xf32>
    %c0_6 = arith.constant 0 : index
    %c0_7 = arith.constant 0 : index
    %7 = vector.load %arg5[%c0_6, %c0_7] : memref<128x128xf32, #tpu.memory_space<vmem>>, vector<128x128xf32>
    %cst_8 = arith.constant dense<0.000000e+00> : vector<16x128xf32>
    %8 = tpu.matmul %5, %7, %cst_8 {dimension_numbers = #tpu.dot_dimension_numbers<[1], [0], [0], [1], [0, 0, 1, 1], [], []>} : vector<16x128xf32>, vector<128x128xf32>, vector<16x128xf32> -> vector<16x128xf32>
    %9 = arith.addf %6, %8 : vector<16x128xf32>
    %c0_9 = arith.constant 0 : index
    %c0_10 = arith.constant 0 : index
    %10 = vector.load %arg8[%c0_9, %c0_10] : memref<16x128xf32, #tpu.memory_space<vmem>>, vector<16x128xf32>
    tpu.vector_store %arg8[%c0_9, %c0_10], %9 {strides = array<i32>} : memref<16x128xf32, #tpu.memory_space<vmem>>, vector<16x128xf32>,
    %c0_i32_11 = arith.constant 0 : i32
    %11 = arith.cmpi eq, %arg2, %c0_i32_11 : i32
    %12 = arith.extui %11 : i1 to i32
    %c0_i32_12 = arith.constant 0 : i32
    %13 = arith.cmpi ne, %12, %c0_i32_12 : i32
    scf.if %13 {
      %c0_13 = arith.constant 0 : index
      %c0_14 = arith.constant 0 : index
      %14 = vector.load %arg8[%c0_13, %c0_14] : memref<16x128xf32, #tpu.memory_space<vmem>>, vector<16x128xf32>
      %c0_15 = arith.constant 0 : index
      %c0_16 = arith.constant 0 : index
      %15 = vector.load %arg6[%c0_15, %c0_16] : memref<1x128xf32, #tpu.memory_space<vmem>>, vector<1x128xf32>
      %16 = vector.broadcast %15 : vector<1x128xf32> to vector<16x128xf32>
      %17 = arith.addf %14, %16 : vector<16x128xf32>
      %cst_17 = arith.constant 0.000000e+00 : f32
      %18 = vector.broadcast %cst_17 : f32 to vector<16x128xf32>
      %19 = arith.maximumf %17, %18 : vector<16x128xf32>
      %c0_18 = arith.constant 0 : index
      %c0_19 = arith.constant 0 : index
      %20 = vector.load %arg7[%c0_18, %c0_19] : memref<16x128xf32, #tpu.memory_space<vmem>>, vector<16x128xf32>
      tpu.vector_store %arg7[%c0_18, %c0_19], %19 {strides = array<i32>} : memref<16x128xf32, #tpu.memory_space<vmem>>, vector<16x128xf32>,
    } else {
    }
    return
  }
  func.func @transform_0(%arg0: i32, %arg1: i32, %arg2: i32) -> (i32, i32) {
    %c0_i32 = arith.constant 0 : i32
    %c0_i32_0 = arith.constant 0 : i32
    return %arg0, %c0_i32 : i32, i32
  }
  func.func @transform_1(%arg0: i32, %arg1: i32, %arg2: i32) -> (i32, i32) {
    %c0_i32 = arith.constant 0 : i32
    %c0_i32_0 = arith.constant 0 : i32
    return %c0_i32, %arg2 : i32, i32
  }
  func.func @transform_2(%arg0: i32, %arg1: i32, %arg2: i32) -> (i32, i32) {
    %c0_i32 = arith.constant 0 : i32
    return %arg2, %arg1 : i32, i32
  }
  func.func @transform_3(%arg0: i32, %arg1: i32, %arg2: i32) -> (i32, i32) {
    %c0_i32 = arith.constant 0 : i32
    %c0_i32_0 = arith.constant 0 : i32
    return %c0_i32, %arg1 : i32, i32
  }
  func.func @transform_4(%arg0: i32, %arg1: i32, %arg2: i32) -> (i32, i32) {
    %c0_i32 = arith.constant 0 : i32
    return %arg0, %arg1 : i32, i32
  }
}

</mosaic_0001>

<llo_original>
// kernel: tpu_custom_call.1
$region0: #{tpu_custom_call.1}
  #allocation0 [shape = 'u32[]', space=smem, size = 0x4, offset = 0x4, fixed_abs, tag = 'smem constant byte address 0x4 - core index']
  #allocation1 [shape = 'u32[144,128]{1,0:T(1,128)}', space=vmem, size = 0x12000, scoped, tag = 'internal scratch']
  #allocation2 [shape = 'f32[16,128]{1,0:T(8,128)}', space=vmem, size = 0x2000, scoped, tag = 'scratch operand']
  %s0 = inlined_call_operand.hbm [shape: f32[16,128], index: 0, kind: input, shape index: {}]
  %s1 = inlined_call_operand.hbm [shape: f32[128,128], index: 1, kind: input, shape index: {}]
  %s2 = inlined_call_operand.hbm [shape: f32[128,128], index: 2, kind: input, shape index: {}]
  %s3 = inlined_call_operand.vmem [shape: f32[1,128], index: 3, kind: input, shape index: {}]
  %s4 = inlined_call_operand.hbm [shape: f32[16,128], index: 4, kind: output, shape index: {}]
  %s5 = sld [smem:[#allocation0]]
  $region46: #{tpu_custom_call.1} parent=0
    _
  %s7 = ssub.s32 1, %s5
  %s8 = scalar_select 0, %s7, %s5
  $region1: #{tpu_custom_call.1} parent=0
    #allocation3 [shape = 'u8[8192]{0}', space=vmem, size = 0x2000, scoped, tag = 'input window, operand 0, single buffered']
    #allocation4 [shape = 's32[1]{0}', space=sflag, size = 0x4, scoped, tag = 'scoped memory for tpu_custom_call.1']
    #allocation5 [shape = 's32[1]{0}', space=sflag, size = 0x4, scoped, tag = 'scoped memory for tpu_custom_call.1']
    #allocation6 [shape = 'u8[65536]{0}', space=vmem, size = 0x10000, scoped, tag = 'input window, operand 1, single buffered']
    #allocation7 [shape = 's32[1]{0}', space=sflag, size = 0x4, scoped, tag = 'scoped memory for tpu_custom_call.1']
    #allocation8 [shape = 'u8[65536]{0}', space=vmem, size = 0x10000, scoped, tag = 'input window, operand 2, single buffered']
    #allocation9 [shape = 'u8[8192]{0}', space=vmem, size = 0x2000, scoped, tag = 'output window, operand 0, single buffered']
    %9 = vsyncpa [#allocation4], 0
    %10 = vsyncpa [#allocation7], 0
    %11 = vsyncpa [#allocation5], 0
    // Predicated region
    $region2: #{tpu_custom_call.1} parent=1 // pred_check
      _
    $region3: #{tpu_custom_call.1} parent=1 // pred_check_branch
      %13 = sbr.rel (0) target = $region5
    $region4: #{tpu_custom_call.1} parent=1 // pred_region
      %s15 = ssub.s32 256, 256
      %16 = vsyncadd [#allocation4], %s15
      %s17 = sshll.u32 [#allocation3], 4
      %s18 = int_to_ptr.vmem [resolvable:$true] %s17
      %23 = dma.hbm_to_vmem [thread:$0]  %s0, 256, %s18, [#allocation4], 128, 128, 8
    $region5: #{tpu_custom_call.1} parent=1 // pred_fallthru
      _
    // Predicated region
    $region6: #{tpu_custom_call.1} parent=1 // pred_check
      _
    $region7: #{tpu_custom_call.1} parent=1 // pred_check_branch
      %25 = sbr.rel (0) target = $region9
    $region8: #{tpu_custom_call.1} parent=1 // pred_region
      %s27 = ssub.s32 2048, 2048
      %28 = vsyncadd [#allocation7], %s27
      %s29 = sshll.u32 [#allocation6], 4
      %s30 = int_to_ptr.vmem [resolvable:$true] %s29
      %35 = dma.hbm_to_vmem [thread:$0]  %s1, 2048, %s30, [#allocation7], 128, 128, 8
    $region9: #{tpu_custom_call.1} parent=1 // pred_fallthru
      _
    // Predicated region
    $region10: #{tpu_custom_call.1} parent=1 // pred_check
      _
    $region11: #{tpu_custom_call.1} parent=1 // pred_check_branch
      %37 = sbr.rel (0) target = $region13
    $region12: #{tpu_custom_call.1} parent=1 // pred_region
      %s39 = ssub.s32 2048, 2048
      %40 = vsyncadd [#allocation7], %s39
      %s41 = sshll.u32 [#allocation8], 4
      %s42 = int_to_ptr.vmem [resolvable:$true] %s41
      %47 = dma.hbm_to_vmem [thread:$0]  %s2, 2048, %s42, [#allocation7], 128, 128, 8
    $region13: #{tpu_custom_call.1} parent=1 // pred_fallthru
      _
    // Predicated region
    $region14: #{tpu_custom_call.1} parent=1 // pred_check
      _
    $region15: #{tpu_custom_call.1} parent=1 // pred_check_branch
      %49 = sbr.rel (0) target = $region17
    $region16: #{tpu_custom_call.1} parent=1 // pred_region
      _
    $region17: #{tpu_custom_call.1} parent=1 // pred_fallthru
      _
    // Predicated region
    $region18: #{tpu_custom_call.1} parent=1 // pred_check
      _
    $region19: #{tpu_custom_call.1} parent=1 // pred_check_branch
      %51 = sbr.rel (0) target = $region21
    $region20: #{tpu_custom_call.1} parent=1 // pred_region
      %52 = dma.done [#allocation4], 256
    $region21: #{tpu_custom_call.1} parent=1 // pred_fallthru
      _
    // Predicated region
    $region22: #{tpu_custom_call.1} parent=1 // pred_check
      _
    $region23: #{tpu_custom_call.1} parent=1 // pred_check_branch
      %54 = sbr.rel (0) target = $region25
    $region24: #{tpu_custom_call.1} parent=1 // pred_region
      %55 = dma.done [#allocation7], 2048
    $region25: #{tpu_custom_call.1} parent=1 // pred_fallthru
      _
    // Predicated region
    $region26: #{tpu_custom_call.1} parent=1 // pred_check
      _
    $region27: #{tpu_custom_call.1} parent=1 // pred_check_branch
      %57 = sbr.rel (0) target = $region29
    $region28: #{tpu_custom_call.1} parent=1 // pred_region
      %58 = dma.done [#allocation7], 2048
    $region29: #{tpu_custom_call.1} parent=1 // pred_fallthru
      _
    %p59 = scmp.eq.s32.totalorder 0, 0
    // Predicated region
    $region30: #{tpu_custom_call.1} parent=1 // pred_check
      %p60 = pneg %p59
    $region31: #{tpu_custom_call.1} parent=1 // pred_check_branch
      %62 = sbr.rel (%p60) target = $region33
    $region32: #{tpu_custom_call.1} parent=1 // pred_region
      %63 = vst [vmem:[#allocation2] sm:$0xff] 0.0
      %64 = vst [vmem:[#allocation2 + $0x8] sm:$0xff] 0.0
    $region33: #{tpu_custom_call.1} parent=1 // pred_fallthru
      _
    %v65 = vld [vmem:[#allocation3] sm:$0xff]
    %v66 = vld [vmem:[#allocation3 + $0x8] sm:$0xff]
    %v67 = vld [vmem:[#allocation6] sm:$0xff]
    %v68 = vld [vmem:[#allocation6 + $0x8] sm:$0xff]
    %v69 = vld [vmem:[#allocation6 + $0x10] sm:$0xff]
    %v70 = vld [vmem:[#allocation6 + $0x18] sm:$0xff]
    %v71 = vld [vmem:[#allocation6 + $0x20] sm:$0xff]
    %v72 = vld [vmem:[#allocation6 + $0x28] sm:$0xff]
    %v73 = vld [vmem:[#allocation6 + $0x30] sm:$0xff]
    %v74 = vld [vmem:[#allocation6 + $0x38] sm:$0xff]
    %v75 = vld [vmem:[#allocation6 + $0x40] sm:$0xff]
    %v76 = vld [vmem:[#allocation6 + $0x48] sm:$0xff]
    %v77 = vld [vmem:[#allocation6 + $0x50] sm:$0xff]
    %v78 = vld [vmem:[#allocation6 + $0x58] sm:$0xff]
    %v79 = vld [vmem:[#allocation6 + $0x60] sm:$0xff]
    %v80 = vld [vmem:[#allocation6 + $0x68] sm:$0xff]
    %v81 = vld [vmem:[#allocation6 + $0x70] sm:$0xff]
    %v82 = vld [vmem:[#allocation6 + $0x78] sm:$0xff]
    %83 = vmatprep.subr.mxu0 0.0
    %84 = vmatpush1.msra.mxu0 %v67
    %85 = vmatprep.subr.mxu0 0.0
    %86 = vmatpush1.msra.mxu0 %v68
    %87 = vmatprep.subr.mxu0 0.0
    %88 = vmatpush1.msra.mxu0 %v69
    %89 = vmatprep.subr.mxu0 0.0
    %90 = vmatpush1.msra.mxu0 %v70
    %91 = vmatprep.subr.mxu0 0.0
    %92 = vmatpush1.msra.mxu0 %v71
    %93 = vmatprep.subr.mxu0 0.0
    %94 = vmatpush1.msra.mxu0 %v72
    %95 = vmatprep.subr.mxu0 0.0
    %96 = vmatpush1.msra.mxu0 %v73
    %97 = vmatprep.subr.mxu0 0.0
    %98 = vmatpush1.msra.mxu0 %v74
    %99 = vmatprep.subr.mxu0 0.0
    %100 = vmatpush1.msra.mxu0 %v75
    %101 = vmatprep.subr.mxu0 0.0
    %102 = vmatpush1.msra.mxu0 %v76
    %103 = vmatprep.subr.mxu0 0.0
    %104 = vmatpush1.msra.mxu0 %v77
    %105 = vmatprep.subr.mxu0 0.0
    %106 = vmatpush1.msra.mxu0 %v78
    %107 = vmatprep.subr.mxu0 0.0
    %108 = vmatpush1.msra.mxu0 %v79
    %109 = vmatprep.subr.mxu0 0.0
    %110 = vmatpush1.msra.mxu0 %v80
    %111 = vmatprep.subr.mxu0 0.0
    %112 = vmatpush1.msra.mxu0 %v81
    %113 = vmatprep.subr.mxu0 0.0
    %114 = vmatpush1.msra.mxu0 %v82
    %115 = vmatprep.subr.mxu0 0.0
    %116 = vmatpush1.msra.mxu0 0.0
    %117 = vmatprep.subr.mxu0 0.0
    %118 = vmatpush1.msra.mxu0 0.0
    %119 = vmatprep.subr.mxu0 0.0
    %120 = vmatpush1.msra.mxu0 0.0
    %121 = vmatprep.subr.mxu0 0.0
    %122 = vmatpush1.msra.mxu0 0.0
    %123 = vmatprep.subr.mxu0 0.0
    %124 = vmatpush1.msra.mxu0 0.0
    %125 = vmatprep.subr.mxu0 0.0
    %126 = vmatpush1.msra.mxu0 0.0
    %127 = vmatprep.subr.mxu0 0.0
    %128 = vmatpush1.msra.mxu0 0.0
    %129 = vmatprep.subr.mxu0 0.0
    %130 = vmatpush1.msra.mxu0 0.0
    %131 = vmatprep.subr.mxu0 0.0
    %132 = vmatpush1.msra.mxu0 0.0
    %133 = vmatprep.subr.mxu0 0.0
    %134 = vmatpush1.msra.mxu0 0.0
    %135 = vmatprep.subr.mxu0 0.0
    %136 = vmatpush1.msra.mxu0 0.0
    %137 = vmatprep.subr.mxu0 0.0
    %138 = vmatpush1.msra.mxu0 0.0
    %139 = vmatprep.subr.mxu0 0.0
    %140 = vmatpush1.msra.mxu0 0.0
    %141 = vmatprep.subr.mxu0 0.0
    %142 = vmatpush1.msra.mxu0 0.0
    %143 = vmatprep.subr.mxu0 0.0
    %144 = vmatpush1.msra.mxu0 0.0
    %145 = vmatprep.subr.mxu0 0.0
    %146 = vmatpush1.msra.mxu0 0.0
    %147 = vmatprep.mubr.f32.mxu0 0.0
    %148 = vmatmul.mubr.f32.gmra.mrb[0].mxu0 %v65
    %v149 = vpop.f32.mrb[0].mxu0
    %v150 = vadd.f32 0.0, %v149
    %v151 = vpop.f32.mrb[0].mxu0
    %152 = vmatprep.mubr.f32.mxu0 0.0
    %153 = vmatmul.mubr.f32.gmra.mrb[0].mxu0 %v66
    %v154 = vpop.f32.mrb[0].mxu0
    %v155 = vadd.f32 0.0, %v154
    %v156 = vpop.f32.mrb[0].mxu0
    %157 = vdwg.mxu0
    %v158 = vld [vmem:[#allocation2] sm:$0xff]
    %v159 = vld [vmem:[#allocation2 + $0x8] sm:$0xff]
    %v160 = vld [vmem:[#allocation8] sm:$0xff]
    %v161 = vld [vmem:[#allocation8 + $0x8] sm:$0xff]
    %v162 = vld [vmem:[#allocation8 + $0x10] sm:$0xff]
    %v163 = vld [vmem:[#allocation8 + $0x18] sm:$0xff]
    %v164 = vld [vmem:[#allocation8 + $0x20] sm:$0xff]
    %v165 = vld [vmem:[#allocation8 + $0x28] sm:$0xff]
    %v166 = vld [vmem:[#allocation8 + $0x30] sm:$0xff]
    %v167 = vld [vmem:[#allocation8 + $0x38] sm:$0xff]
    %v168 = vld [vmem:[#allocation8 + $0x40] sm:$0xff]
    %v169 = vld [vmem:[#allocation8 + $0x48] sm:$0xff]
    %v170 = vld [vmem:[#allocation8 + $0x50] sm:$0xff]
    %v171 = vld [vmem:[#allocation8 + $0x58] sm:$0xff]
    %v172 = vld [vmem:[#allocation8 + $0x60] sm:$0xff]
    %v173 = vld [vmem:[#allocation8 + $0x68] sm:$0xff]
    %v174 = vld [vmem:[#allocation8 + $0x70] sm:$0xff]
    %v175 = vld [vmem:[#allocation8 + $0x78] sm:$0xff]
    %176 = vmatprep.subr.mxu0 0.0
    %177 = vmatpush1.msra.mxu0 %v160
    %178 = vmatprep.subr.mxu0 0.0
    %179 = vmatpush1.msra.mxu0 %v161
    %180 = vmatprep.subr.mxu0 0.0
    %181 = vmatpush1.msra.mxu0 %v162
    %182 = vmatprep.subr.mxu0 0.0
    %183 = vmatpush1.msra.mxu0 %v163
    %184 = vmatprep.subr.mxu0 0.0
    %185 = vmatpush1.msra.mxu0 %v164
    %186 = vmatprep.subr.mxu0 0.0
    %187 = vmatpush1.msra.mxu0 %v165
    %188 = vmatprep.subr.mxu0 0.0
    %189 = vmatpush1.msra.mxu0 %v166
    %190 = vmatprep.subr.mxu0 0.0
    %191 = vmatpush1.msra.mxu0 %v167
    %192 = vmatprep.subr.mxu0 0.0
    %193 = vmatpush1.msra.mxu0 %v168
    %194 = vmatprep.subr.mxu0 0.0
    %195 = vmatpush1.msra.mxu0 %v169
    %196 = vmatprep.subr.mxu0 0.0
    %197 = vmatpush1.msra.mxu0 %v170
    %198 = vmatprep.subr.mxu0 0.0
    %199 = vmatpush1.msra.mxu0 %v171
    %200 = vmatprep.subr.mxu0 0.0
    %201 = vmatpush1.msra.mxu0 %v172
    %202 = vmatprep.subr.mxu0 0.0
    %203 = vmatpush1.msra.mxu0 %v173
    %204 = vmatprep.subr.mxu0 0.0
    %205 = vmatpush1.msra.mxu0 %v174
    %206 = vmatprep.subr.mxu0 0.0
    %207 = vmatpush1.msra.mxu0 %v175
    %208 = vmatprep.subr.mxu0 0.0
    %209 = vmatpush1.msra.mxu0 0.0
    %210 = vmatprep.subr.mxu0 0.0
    %211 = vmatpush1.msra.mxu0 0.0
    %212 = vmatprep.subr.mxu0 0.0
    %213 = vmatpush1.msra.mxu0 0.0
    %214 = vmatprep.subr.mxu0 0.0
    %215 = vmatpush1.msra.mxu0 0.0
    %216 = vmatprep.subr.mxu0 0.0
    %217 = vmatpush1.msra.mxu0 0.0
    %218 = vmatprep.subr.mxu0 0.0
    %219 = vmatpush1.msra.mxu0 0.0
    %220 = vmatprep.subr.mxu0 0.0
    %221 = vmatpush1.msra.mxu0 0.0
    %222 = vmatprep.subr.mxu0 0.0
    %223 = vmatpush1.msra.mxu0 0.0
    %224 = vmatprep.subr.mxu0 0.0
    %225 = vmatpush1.msra.mxu0 0.0
    %226 = vmatprep.subr.mxu0 0.0
    %227 = vmatpush1.msra.mxu0 0.0
    %228 = vmatprep.subr.mxu0 0.0
    %229 = vmatpush1.msra.mxu0 0.0
    %230 = vmatprep.subr.mxu0 0.0
    %231 = vmatpush1.msra.mxu0 0.0
    %232 = vmatprep.subr.mxu0 0.0
    %233 = vmatpush1.msra.mxu0 0.0
    %234 = vmatprep.subr.mxu0 0.0
    %235 = vmatpush1.msra.mxu0 0.0
    %236 = vmatprep.subr.mxu0 0.0
    %237 = vmatpush1.msra.mxu0 0.0
    %238 = vmatprep.subr.mxu0 0.0
    %239 = vmatpush1.msra.mxu0 0.0
    %240 = vmatprep.mubr.f32.mxu0 0.0
    %241 = vmatmul.mubr.f32.gmra.mrb[0].mxu0 %v150
    %v242 = vpop.f32.mrb[0].mxu0
    %v243 = vadd.f32 0.0, %v242
    %v244 = vpop.f32.mrb[0].mxu0
    %245 = vmatprep.mubr.f32.mxu0 0.0
    %246 = vmatmul.mubr.f32.gmra.mrb[0].mxu0 %v155
    %v247 = vpop.f32.mrb[0].mxu0
    %v248 = vadd.f32 0.0, %v247
    %v249 = vpop.f32.mrb[0].mxu0
    %250 = vdwg.mxu0
    %v251 = vadd.f32 %v158, %v243
    %v252 = vadd.f32 %v159, %v248
    %253 = vst [vmem:[#allocation2] sm:$0xff] %v251
    %254 = vst [vmem:[#allocation2 + $0x8] sm:$0xff] %v252
    // Predicated region
    $region34: #{tpu_custom_call.1} parent=1 // pred_check
      %p255 = pneg %p59
    $region35: #{tpu_custom_call.1} parent=1 // pred_check_branch
      %257 = sbr.rel (%p255) target = $region37
    $region36: #{tpu_custom_call.1} parent=1 // pred_region
      %v258 = vld [vmem:[#allocation2] sm:$0xff]
      %v259 = vld [vmem:[#allocation2 + $0x8] sm:$0xff]
      %v260 = vld [vmem:[%s3] sm:$0x1]
      %v262 = vlaneseq
      %v263 = vshrl.u32 %v262, 7
      %v264 = vsub.s32 0, %v263
      %v265 = vrot.slane %v260, %v264
      %v267 = vadd.f32 %v258, %v265
      %v268 = vadd.f32 %v259, %v265
      %v269 = vmax.f32 %v267, 0.0
      %v270 = vmax.f32 %v268, 0.0
      %271 = vst [vmem:[#allocation9] sm:$0xff] %v269
      %272 = vst [vmem:[#allocation9 + $0x8] sm:$0xff] %v270
    $region37: #{tpu_custom_call.1} parent=1 // pred_fallthru
      _
    // Predicated region
    $region38: #{tpu_custom_call.1} parent=1 // pred_check
      _
    $region39: #{tpu_custom_call.1} parent=1 // pred_check_branch
      %274 = sbr.rel (0) target = $region41
    $region40: #{tpu_custom_call.1} parent=1 // pred_region
      %s276 = ssub.s32 256, 256
      %277 = vsyncadd [#allocation5], %s276
      %s278 = sshll.u32 [#allocation9], 4
      %s279 = int_to_ptr.vmem [resolvable:$true] %s278
      %284 = dma.vmem_to_hbm [thread:$0]  %s279, 256, %s4, [#allocation5], 128, 128, 8
    $region41: #{tpu_custom_call.1} parent=1 // pred_fallthru
      _
    // Predicated region
    $region42: #{tpu_custom_call.1} parent=1 // pred_check
      _
    $region43: #{tpu_custom_call.1} parent=1 // pred_check_branch
      %286 = sbr.rel (0) target = $region45
    $region44: #{tpu_custom_call.1} parent=1 // pred_region
      %287 = dma.done [#allocation5], 256
    $region45: #{tpu_custom_call.1} parent=1 // pred_fallthru
      _
    %288 = vsyncpa [#allocation4], 1
    %289 = vsyncpa [#allocation7], 1
    %290 = vsyncpa [#allocation5], 1

</llo_original>
